<compile_context>
chip_gen: v7x
topology: tpu7x:2x2x1
jax: 0.10.0
libtpu: 0.0.40
codegen_flags: <defaults>
</compile_context>

<pallas_src>
import math
from functools import partial

import jax
import jax.numpy as jnp
from jax.experimental import pallas as pl
from jax.experimental.pallas import tpu as pltpu


def _round_up(n, k):
    return ((n + k - 1) // k) * k


def _margin_cosine_kernel(x_ref, w_ref, xsq_ref, wsq_ref, label_ref, o_ref, *,
                          s, m, eps, block_c):
    # Inner products on the MXU; contraction over the lane (feature) axis of
    # both operands -- no transpose / XLU relayout of the [TC, D] weight tile.
    ip = jax.lax.dot_general(
        x_ref[...], w_ref[...],
        dimension_numbers=(((1,), (1,)), ((), ())),
        preferred_element_type=jnp.float32,
    )                                                              # [TB, TC] f32

    # 1 / max(||x|| * ||w||, eps) == rsqrt(max(||x||^2 * ||w||^2, eps^2)).
    # rsqrt lands on the EUP slot; squared norms are hoisted into the wrapper.
    denom_sq = jnp.maximum(xsq_ref[...] * wsq_ref[...], eps * eps)  # [TB, TC]
    cosine = ip * jax.lax.rsqrt(denom_sq)

    # Margin: subtract s*m from the column matching the label. Column iota is
    # (1, TC) and broadcasts against the [TB, 1] label tile. Grid axis 0 is the
    # class-tile axis, so offset by its global base.
    col = (jax.lax.broadcasted_iota(jnp.int32, (1, block_c), 1)
           + block_c * pl.program_id(0))                           # [1, TC]
    is_target = col == label_ref[...]                              # -> [TB, TC]

    scaled = s * cosine
    o_ref[...] = jnp.where(is_target, scaled - s * m, scaled).astype(o_ref.dtype)


def margin_cosine_product(x, weight, label, *, s=30.0, m=0.4, eps=1e-8,
                          block_b=256, block_c=2048,
                          compute_dtype=None, out_dtype=jnp.float32):
    """x: [B, in_features], weight: [out_features, in_features], label: [B] int
    -> [B, out_features] in `out_dtype`.

    compute_dtype: optional dtype for the MXU operands (e.g. jnp.bfloat16) to
    halve HBM read traffic; norms / accumulation / epilogue stay f32.
    """
    B, D = x.shape
    C, D2 = weight.shape
    assert D == D2, "feature dims must match"

    # Hoisted squared norms (f32), from the original-precision inputs, so they
    # are not re-reduced on the XLU for every grid step.
    x_sq = jnp.sum(jnp.square(x.astype(jnp.float32)), axis=1, keepdims=True)         # [B, 1]
    w_sq = jnp.sum(jnp.square(weight.astype(jnp.float32)), axis=1, keepdims=True).T  # [1, C]

    label2d = label.astype(jnp.int32).reshape(B, 1)

    if compute_dtype is not None:
        x = x.astype(compute_dtype)
        weight = weight.astype(compute_dtype)

    # Lane-dense, hardware-aligned tiles; small problems collapse to one tile.
    tb = min(block_b, _round_up(B, 8))
    tc = min(block_c, _round_up(C, 128))

    # Class axis OUTER (leading "parallel" axis -> v7x 2-TC shard on C, and the
    # weight tile is fetched once per class tile), batch axis inner (x tiles
    # are tiny and stream). Ragged last blocks are handled by Pallas masked
    # loads/stores -- no jnp.pad copies of W or the output.
    grid = (pl.cdiv(C, tc), pl.cdiv(B, tb))

    kernel = partial(_margin_cosine_kernel, s=float(s), m=float(m),
                     eps=float(eps), block_c=tc)

    out = pl.pallas_call(
        kernel,
        out_shape=jax.ShapeDtypeStruct((B, C), out_dtype),
        grid_spec=pltpu.PrefetchScalarGridSpec(
            num_scalar_prefetch=0,
            grid=grid,
            in_specs=[
                pl.BlockSpec((tb, D), lambda j, i: (i, 0)),   # x tile (streams, small)
                pl.BlockSpec((tc, D), lambda j, i: (j, 0)),   # weight tile (resident per j)
                pl.BlockSpec((tb, 1), lambda j, i: (i, 0)),   # ||x||^2
                pl.BlockSpec((1, tc), lambda j, i: (0, j)),   # ||w||^2
                pl.BlockSpec((tb, 1), lambda j, i: (i, 0)),   # label
                # If profiling shows the weight DMA exposed, add
                # pipeline_mode=pl.Buffered(3) to the weight spec above.
            ],
            out_specs=pl.BlockSpec((tb, tc), lambda j, i: (i, j)),
        ),
        compiler_params=pltpu.CompilerParams(
            dimension_semantics=("parallel", "parallel"),
            # ~14 MB needed at tb=256, tc=2048, D=512 f32; 48 MiB leaves
            # headroom while staying inside v7x's 64 MiB physical VMEM.
            vmem_limit_bytes=48 * 1024 * 1024,
        ),
    )(x, weight, x_sq, w_sq, label2d)

    return out


def xavier_uniform(key, shape, dtype=jnp.float32):
    # nn.init.xavier_uniform_ for a [fan_out, fan_in] weight matrix.
    fan_out, fan_in = shape
    bound = math.sqrt(6.0 / (fan_in + fan_out))
    return jax.random.uniform(key, shape, dtype=dtype, minval=-bound, maxval=bound)


def _reference(x, w, label, s, m, eps=1e-8):
    ip = x @ w.T
    denom = jnp.maximum(
        jnp.linalg.norm(x, axis=1, keepdims=True)
        * jnp.linalg.norm(w, axis=1, keepdims=True).T,
        eps,
    )
    cosine = ip / denom
    one_hot = jax.nn.one_hot(label, w.shape[0], dtype=jnp.float32)
    return s * (cosine - one_hot * m)


if __name__ == "__main__":
    s, m = 30.0, 0.4
    key = jax.random.PRNGKey(0)

    # Case 1: module-default small shapes (single ragged tile).
    k1, k2, k3, key = jax.random.split(key, 4)
    B, D, C = 8, 32, 16
    x = jax.random.normal(k1, (B, D), dtype=jnp.float32)
    w = xavier_uniform(k2, (C, D))
    lab = jax.random.randint(k3, (B,), 0, C, dtype=jnp.int32)
    out = jax.block_until_ready(margin_cosine_product(x, w, lab, s=s, m=m))
    ref = _reference(x, w, lab, s, m)
    assert out.shape == ref.shape, "shape mismatch vs reference"
    assert jnp.allclose(out, ref, atol=1e-4, rtol=1e-4), "mismatch vs reference (case 1)"

    # Case 2: multi-tile grid with B and C NOT divisible by the tile sizes
    # (exercises the ragged last weight/output blocks that replaced jnp.pad).
    k1, k2, k3, key = jax.random.split(key, 4)
    B, D, C = 24, 64, 300
    x = jax.random.normal(k1, (B, D), dtype=jnp.float32)
    w = xavier_uniform(k2, (C, D))
    lab = jax.random.randint(k3, (B,), 0, C, dtype=jnp.int32)
    out = jax.block_until_ready(
        margin_cosine_product(x, w, lab, s=s, m=m, block_b=16, block_c=128))
    ref = _reference(x, w, lab, s, m)
    assert out.shape == ref.shape, "shape mismatch vs reference"
    assert jnp.allclose(out, ref, atol=1e-4, rtol=1e-4), "mismatch vs reference (case 2)"

    # Case 3: bf16 compute / bf16 output fast path (loose tolerance vs f32 ref).
    out_bf16 = jax.block_until_ready(
        margin_cosine_product(x, w, lab, s=s, m=m, block_b=16, block_c=128,
                              compute_dtype=jnp.bfloat16, out_dtype=jnp.bfloat16))
    assert out_bf16.shape == ref.shape, "shape mismatch vs reference (bf16)"
    assert jnp.allclose(out_bf16.astype(jnp.float32), ref, atol=0.5, rtol=0.05), \
        "mismatch vs reference (bf16 path)"

    print("KERNEL_OK")
</pallas_src>

<mosaic_0001>
module attributes {stable_mosaic.version = 11 : i64} {
  func.func @_margin_cosine_kernel(%arg0: i32, %arg1: i32, %arg2: memref<8x32xf32, #tpu.memory_space<vmem>>, %arg3: memref<128x32xf32, #tpu.memory_space<vmem>>, %arg4: memref<8x1xf32, #tpu.memory_space<vmem>>, %arg5: memref<1x128xf32, #tpu.memory_space<vmem>>, %arg6: memref<8x1xi32, #tpu.memory_space<vmem>>, %arg7: memref<8x128xf32, #tpu.memory_space<vmem>>) attributes {dimension_semantics = [#tpu.dimension_semantics<parallel>, #tpu.dimension_semantics<parallel>], iteration_bounds = array<i64: 1, 1>, scalar_prefetch = 0 : i64, scratch_operands = 0 : i64, tpu.core_type = #tpu.core_type<tc>, window_params = [{transform_indices = @transform_0, window_bounds = array<i64: 8, 32>}, {transform_indices = @transform_1, window_bounds = array<i64: 128, 32>}, {transform_indices = @transform_2, window_bounds = array<i64: 8, 1>}, {transform_indices = @transform_3, window_bounds = array<i64: 1, 128>}, {transform_indices = @transform_4, window_bounds = array<i64: 8, 1>}, {transform_indices = @transform_5, window_bounds = array<i64: 8, 128>}]} {
    %c0 = arith.constant 0 : index
    %c0_0 = arith.constant 0 : index
    %0 = vector.load %arg2[%c0, %c0_0] : memref<8x32xf32, #tpu.memory_space<vmem>>, vector<8x32xf32>
    %c0_1 = arith.constant 0 : index
    %c0_2 = arith.constant 0 : index
    %1 = vector.load %arg3[%c0_1, %c0_2] : memref<128x32xf32, #tpu.memory_space<vmem>>, vector<128x32xf32>
    %cst = arith.constant dense<0.000000e+00> : vector<8x128xf32>
    %2 = tpu.matmul %0, %1, %cst {dimension_numbers = #tpu.dot_dimension_numbers<[1], [1], [0], [0], [0, 0, 1, 0], [], []>} : vector<8x32xf32>, vector<128x32xf32>, vector<8x128xf32> -> vector<8x128xf32>
    %c0_3 = arith.constant 0 : index
    %c0_4 = arith.constant 0 : index
    %3 = vector.load %arg4[%c0_3, %c0_4] : memref<8x1xf32, #tpu.memory_space<vmem>>, vector<8x1xf32>
    %c0_5 = arith.constant 0 : index
    %c0_6 = arith.constant 0 : index
    %4 = vector.load %arg5[%c0_5, %c0_6] : memref<1x128xf32, #tpu.memory_space<vmem>>, vector<1x128xf32>
    %5 = vector.broadcast %3 : vector<8x1xf32> to vector<8x128xf32>
    %6 = vector.broadcast %4 : vector<1x128xf32> to vector<8x128xf32>
    %7 = arith.mulf %5, %6 : vector<8x128xf32>
    %cst_7 = arith.constant 1.000000e-16 : f32
    %8 = vector.broadcast %cst_7 : f32 to vector<8x128xf32>
    %9 = arith.maximumf %7, %8 : vector<8x128xf32>
    %10 = math.rsqrt %9 : vector<8x128xf32>
    %11 = arith.mulf %2, %10 : vector<8x128xf32>
    %12 = tpu.iota {dimensions = array<i32: 1>} : vector<1x128xi32>
    %c128_i32 = arith.constant 128 : i32
    %13 = arith.muli %c128_i32, %arg0 : i32
    %14 = vector.broadcast %13 : i32 to vector<1x128xi32>
    %15 = arith.addi %12, %14 : vector<1x128xi32>
    %c0_8 = arith.constant 0 : index
    %c0_9 = arith.constant 0 : index
    %16 = vector.load %arg6[%c0_8, %c0_9] : memref<8x1xi32, #tpu.memory_space<vmem>>, vector<8x1xi32>
    %17 = vector.broadcast %15 : vector<1x128xi32> to vector<8x128xi32>
    %18 = vector.broadcast %16 : vector<8x1xi32> to vector<8x128xi32>
    %19 = arith.cmpi eq, %17, %18 : vector<8x128xi32>
    %cst_10 = arith.constant 3.000000e+01 : f32
    %20 = vector.broadcast %cst_10 : f32 to vector<8x128xf32>
    %21 = arith.mulf %20, %11 : vector<8x128xf32>
    %cst_11 = arith.constant 1.200000e+01 : f32
    %22 = vector.broadcast %cst_11 : f32 to vector<8x128xf32>
    %23 = arith.subf %21, %22 : vector<8x128xf32>
    %24 = arith.select %19, %23, %21 : vector<8x128xi1>, vector<8x128xf32>
    %c0_12 = arith.constant 0 : index
    %c0_13 = arith.constant 0 : index
    %25 = vector.load %arg7[%c0_12, %c0_13] : memref<8x128xf32, #tpu.memory_space<vmem>>, vector<8x128xf32>
    tpu.vector_store %arg7[%c0_12, %c0_13], %24 {strides = array<i32>} : memref<8x128xf32, #tpu.memory_space<vmem>>, vector<8x128xf32>,
    return
  }
  func.func @transform_0(%arg0: i32, %arg1: i32) -> (i32, i32) {
    %c0_i32 = arith.constant 0 : i32
    %c0_i32_0 = arith.constant 0 : i32
    return %arg1, %c0_i32 : i32, i32
  }
  func.func @transform_1(%arg0: i32, %arg1: i32) -> (i32, i32) {
    %c0_i32 = arith.constant 0 : i32
    %c0_i32_0 = arith.constant 0 : i32
    return %arg0, %c0_i32 : i32, i32
  }
  func.func @transform_2(%arg0: i32, %arg1: i32) -> (i32, i32) {
    %c0_i32 = arith.constant 0 : i32
    %c0_i32_0 = arith.constant 0 : i32
    return %arg1, %c0_i32 : i32, i32
  }
  func.func @transform_3(%arg0: i32, %arg1: i32) -> (i32, i32) {
    %c0_i32 = arith.constant 0 : i32
    %c0_i32_0 = arith.constant 0 : i32
    return %c0_i32, %arg0 : i32, i32
  }
  func.func @transform_4(%arg0: i32, %arg1: i32) -> (i32, i32) {
    %c0_i32 = arith.constant 0 : i32
    %c0_i32_0 = arith.constant 0 : i32
    return %arg1, %c0_i32 : i32, i32
  }
  func.func @transform_5(%arg0: i32, %arg1: i32) -> (i32, i32) {
    %c0_i32 = arith.constant 0 : i32
    return %arg1, %arg0 : i32, i32
  }
}

</mosaic_0001>

<llo_original>
// kernel: tpu_custom_call.1
$region0: #{tpu_custom_call.1}
  #allocation0 [shape = 'u32[]', space=smem, size = 0x4, offset = 0x4, fixed_abs, tag = 'smem constant byte address 0x4 - core index']
  #allocation1 [shape = 'u32[144,128]{1,0:T(1,128)}', space=vmem, size = 0x12000, scoped, tag = 'internal scratch']
  %s0 = inlined_call_operand.hbm [shape: f32[8,32], index: 0, kind: input, shape index: {}]
  %s1 = inlined_call_operand.vmem [shape: f32[16,32], index: 1, kind: input, shape index: {}]
  %s2 = inlined_call_operand.vmem [shape: f32[8,1], index: 2, kind: input, shape index: {}]
  %s3 = inlined_call_operand.vmem [shape: f32[1,16], index: 3, kind: input, shape index: {}]
  %s4 = inlined_call_operand.vmem [shape: s32[8,1], index: 4, kind: input, shape index: {}]
  %s5 = inlined_call_operand.hbm [shape: f32[8,16], index: 5, kind: output, shape index: {}]
  %s6 = sld [smem:[#allocation0]]
  $region34: #{tpu_custom_call.1} parent=0
    _
  %s8 = ssub.s32 1, %s6
  %s9 = scalar_select 0, %s8, %s6
  $region1: #{tpu_custom_call.1} parent=0
    #allocation2 [shape = 'u8[4096]{0}', space=vmem, size = 0x1000, scoped, tag = 'input window, operand 0, single buffered']
    #allocation3 [shape = 's32[1]{0}', space=sflag, size = 0x4, scoped, tag = 'scoped memory for tpu_custom_call.1']
    #allocation4 [shape = 's32[1]{0}', space=sflag, size = 0x4, scoped, tag = 'scoped memory for tpu_custom_call.1']
    #allocation5 [shape = 'u8[4096]{0}', space=vmem, size = 0x1000, scoped, tag = 'output window, operand 0, single buffered']
    %10 = vsyncpa [#allocation3], 0
    %11 = vsyncpa [#allocation4], 0
    // Predicated region
    $region2: #{tpu_custom_call.1} parent=1 // pred_check
      _
    $region3: #{tpu_custom_call.1} parent=1 // pred_check_branch
      %13 = sbr.rel (0) target = $region5
    $region4: #{tpu_custom_call.1} parent=1 // pred_region
      %s15 = ssub.s32 128, 128
      %16 = vsyncadd [#allocation3], %s15
      %s18 = sshll.u32 [#allocation2], 4
      %s19 = int_to_ptr.vmem [resolvable:$true] %s18
      %21 = dma.hbm_to_vmem [thread:$0]  %s0, 128, %s19, [#allocation3]
    $region5: #{tpu_custom_call.1} parent=1 // pred_fallthru
      _
    // Predicated region
    $region6: #{tpu_custom_call.1} parent=1 // pred_check
      _
    $region7: #{tpu_custom_call.1} parent=1 // pred_check_branch
      %23 = sbr.rel (0) target = $region9
    $region8: #{tpu_custom_call.1} parent=1 // pred_region
      _
    $region9: #{tpu_custom_call.1} parent=1 // pred_fallthru
      _
    // Predicated region
    $region10: #{tpu_custom_call.1} parent=1 // pred_check
      _
    $region11: #{tpu_custom_call.1} parent=1 // pred_check_branch
      %25 = sbr.rel (0) target = $region13
    $region12: #{tpu_custom_call.1} parent=1 // pred_region
      _
    $region13: #{tpu_custom_call.1} parent=1 // pred_fallthru
      _
    // Predicated region
    $region14: #{tpu_custom_call.1} parent=1 // pred_check
      _
    $region15: #{tpu_custom_call.1} parent=1 // pred_check_branch
      %27 = sbr.rel (0) target = $region17
    $region16: #{tpu_custom_call.1} parent=1 // pred_region
      _
    $region17: #{tpu_custom_call.1} parent=1 // pred_fallthru
      _
    // Predicated region
    $region18: #{tpu_custom_call.1} parent=1 // pred_check
      _
    $region19: #{tpu_custom_call.1} parent=1 // pred_check_branch
      %29 = sbr.rel (0) target = $region21
    $region20: #{tpu_custom_call.1} parent=1 // pred_region
      _
    $region21: #{tpu_custom_call.1} parent=1 // pred_fallthru
      _
    // Predicated region
    $region22: #{tpu_custom_call.1} parent=1 // pred_check
      _
    $region23: #{tpu_custom_call.1} parent=1 // pred_check_branch
      %31 = sbr.rel (0) target = $region25
    $region24: #{tpu_custom_call.1} parent=1 // pred_region
      %32 = dma.done [#allocation3], 128
    $region25: #{tpu_custom_call.1} parent=1 // pred_fallthru
      _
    %v33 = vld [vmem:[#allocation2] sm:$0xff]
    %v34 = vld [vmem:[%s1] sm:$0xff]
    %v35 = vld [vmem:[%s1 + $0x8] sm:$0xff]
    %v36 = vld [vmem:[%s1 + $0x10] sm:$0xff]
    %v37 = vld [vmem:[%s1 + $0x18] sm:$0xff]
    %v38 = vld [vmem:[%s1 + $0x20] sm:$0xff]
    %v39 = vld [vmem:[%s1 + $0x28] sm:$0xff]
    %v40 = vld [vmem:[%s1 + $0x30] sm:$0xff]
    %v41 = vld [vmem:[%s1 + $0x38] sm:$0xff]
    %v42 = vld [vmem:[%s1 + $0x40] sm:$0xff]
    %v43 = vld [vmem:[%s1 + $0x48] sm:$0xff]
    %v44 = vld [vmem:[%s1 + $0x50] sm:$0xff]
    %v45 = vld [vmem:[%s1 + $0x58] sm:$0xff]
    %v46 = vld [vmem:[%s1 + $0x60] sm:$0xff]
    %v47 = vld [vmem:[%s1 + $0x68] sm:$0xff]
    %v48 = vld [vmem:[%s1 + $0x70] sm:$0xff]
    %v49 = vld [vmem:[%s1 + $0x78] sm:$0xff]
    %vm50 = vcmask 261120
    %v52 = vsel %vm50, %v33, 0
    %v55 = vsel %vm50, %v34, 0
    %v58 = vsel %vm50, %v35, 0
    %v61 = vsel %vm50, %v36, 0
    %v64 = vsel %vm50, %v37, 0
    %v67 = vsel %vm50, %v38, 0
    %v70 = vsel %vm50, %v39, 0
    %v73 = vsel %vm50, %v40, 0
    %v76 = vsel %vm50, %v41, 0
    %v79 = vsel %vm50, %v42, 0
    %v82 = vsel %vm50, %v43, 0
    %v85 = vsel %vm50, %v44, 0
    %v88 = vsel %vm50, %v45, 0
    %v91 = vsel %vm50, %v46, 0
    %v94 = vsel %vm50, %v47, 0
    %v97 = vsel %vm50, %v48, 0
    %v100 = vsel %vm50, %v49, 0
    %102 = vmatprep.subr.mxu0 0.0
    %103 = vmatpush1.xpose.msra.mxu0 %v55
    %104 = vmatprep.subr.mxu0 0.0
    %105 = vmatpush1.xpose.msra.mxu0 %v58
    %106 = vmatprep.subr.mxu0 0.0
    %107 = vmatpush1.xpose.msra.mxu0 %v61
    %108 = vmatprep.subr.mxu0 0.0
    %109 = vmatpush1.xpose.msra.mxu0 %v64
    %110 = vmatprep.subr.mxu0 0.0
    %111 = vmatpush1.xpose.msra.mxu0 %v67
    %112 = vmatprep.subr.mxu0 0.0
    %113 = vmatpush1.xpose.msra.mxu0 %v70
    %114 = vmatprep.subr.mxu0 0.0
    %115 = vmatpush1.xpose.msra.mxu0 %v73
    %116 = vmatprep.subr.mxu0 0.0
    %117 = vmatpush1.xpose.msra.mxu0 %v76
    %118 = vmatprep.subr.mxu0 0.0
    %119 = vmatpush1.xpose.msra.mxu0 %v79
    %120 = vmatprep.subr.mxu0 0.0
    %121 = vmatpush1.xpose.msra.mxu0 %v82
    %122 = vmatprep.subr.mxu0 0.0
    %123 = vmatpush1.xpose.msra.mxu0 %v85
    %124 = vmatprep.subr.mxu0 0.0
    %125 = vmatpush1.xpose.msra.mxu0 %v88
    %126 = vmatprep.subr.mxu0 0.0
    %127 = vmatpush1.xpose.msra.mxu0 %v91
    %128 = vmatprep.subr.mxu0 0.0
    %129 = vmatpush1.xpose.msra.mxu0 %v94
    %130 = vmatprep.subr.mxu0 0.0
    %131 = vmatpush1.xpose.msra.mxu0 %v97
    %132 = vmatprep.subr.mxu0 0.0
    %133 = vmatpush1.xpose.msra.mxu0 %v100
    %134 = vmatprep.subr.mxu0 0.0
    %135 = vmatpush1.xpose.msra.mxu0 0.0
    %136 = vmatprep.subr.mxu0 0.0
    %137 = vmatpush1.xpose.msra.mxu0 0.0
    %138 = vmatprep.subr.mxu0 0.0
    %139 = vmatpush1.xpose.msra.mxu0 0.0
    %140 = vmatprep.subr.mxu0 0.0
    %141 = vmatpush1.xpose.msra.mxu0 0.0
    %142 = vmatprep.subr.mxu0 0.0
    %143 = vmatpush1.xpose.msra.mxu0 0.0
    %144 = vmatprep.subr.mxu0 0.0
    %145 = vmatpush1.xpose.msra.mxu0 0.0
    %146 = vmatprep.subr.mxu0 0.0
    %147 = vmatpush1.xpose.msra.mxu0 0.0
    %148 = vmatprep.subr.mxu0 0.0
    %149 = vmatpush1.xpose.msra.mxu0 0.0
    %150 = vmatprep.subr.mxu0 0.0
    %151 = vmatpush1.xpose.msra.mxu0 0.0
    %152 = vmatprep.subr.mxu0 0.0
    %153 = vmatpush1.xpose.msra.mxu0 0.0
    %154 = vmatprep.subr.mxu0 0.0
    %155 = vmatpush1.xpose.msra.mxu0 0.0
    %156 = vmatprep.subr.mxu0 0.0
    %157 = vmatpush1.xpose.msra.mxu0 0.0
    %158 = vmatprep.subr.mxu0 0.0
    %159 = vmatpush1.xpose.msra.mxu0 0.0
    %160 = vmatprep.subr.mxu0 0.0
    %161 = vmatpush1.xpose.msra.mxu0 0.0
    %162 = vmatprep.subr.mxu0 0.0
    %163 = vmatpush1.xpose.msra.mxu0 0.0
    %164 = vmatprep.subr.mxu0 0.0
    %165 = vmatpush1.xpose.msra.mxu0 0.0
    %166 = vmatprep.mubr.f32.mxu0 0.0
    %167 = vmatmul.mubr.f32.gmra.mrb[0].mxu0 %v52
    %v168 = vpop.f32.mrb[0].mxu0
    %v169 = vadd.f32 0.0, %v168
    %v170 = vpop.f32.mrb[0].mxu0
    %171 = vdwg.mxu0
    %v172 = vld [vmem:[%s2] sm:$0xff]
    %v173 = vld [vmem:[%s3] sm:$0x1]
    %175 = vset.pattern.permute.xlu0 0
    %176 = vperm.xlu0 %175, %v172
    %v177 = vpop.permute.xlu0 %176
    %v180 = vlaneseq
    %v181 = vshrl.u32 %v180, 7
    %v182 = vsub.s32 0, %v181
    %v183 = vrot.slane %v173, %v182
    %v185 = vmul.f32 %v177, %v183
    %v186 = vmax.f32 %v185, 1e-16
    %v187 = vrsqrt.pop %v186
    %v188 = vmul.f32 %v169, %v187
    %v189 = vlaneseq
    %v190 = vand.u32 %v189, 127
    %s191 = smul.u32 0, 128
    %v192 = vstv %s191
    %v193 = vadd.s32 %v190, %v192
    %v194 = vld [vmem:[%s4] sm:$0xff]
    %195 = vset.pattern.permute.xlu0 0
    %196 = vperm.xlu0 %195, %v194
    %v197 = vpop.permute.xlu0 %196
    %vm198 = vcmp.eq.s32.totalorder %v193, %v197
    %v199 = vmul.f32 %v188, 30.0
    %v200 = vsub.f32 %v199, 12.0
    %v201 = vsel %vm198, %v200, %v199
    %202 = vst [vmem:[#allocation5] sm:$0xff] %v201
    // Predicated region
    $region26: #{tpu_custom_call.1} parent=1 // pred_check
      _
    $region27: #{tpu_custom_call.1} parent=1 // pred_check_branch
      %204 = sbr.rel (0) target = $region29
    $region28: #{tpu_custom_call.1} parent=1 // pred_region
      %s206 = ssub.s32 128, 128
      %207 = vsyncadd [#allocation4], %s206
      %s209 = sshll.u32 [#allocation5], 4
      %s210 = int_to_ptr.vmem [resolvable:$true] %s209
      %212 = dma.vmem_to_hbm [thread:$0]  %s210, 128, %s5, [#allocation4]
    $region29: #{tpu_custom_call.1} parent=1 // pred_fallthru
      _
    // Predicated region
    $region30: #{tpu_custom_call.1} parent=1 // pred_check
      _
    $region31: #{tpu_custom_call.1} parent=1 // pred_check_branch
      %214 = sbr.rel (0) target = $region33
    $region32: #{tpu_custom_call.1} parent=1 // pred_region
      %215 = dma.done [#allocation4], 128
    $region33: #{tpu_custom_call.1} parent=1 // pred_fallthru
      _
    %216 = vsyncpa [#allocation3], 1
    %217 = vsyncpa [#allocation4], 1

</llo_original>
